<compile_context>
chip_gen: v6e
topology: v6e:2x2x1
jax: 0.10.0
libtpu: 0.0.40
codegen_flags: <defaults>
</compile_context>

<pallas_src>
import math

import jax
import jax.numpy as jnp
from jax import lax
from jax.experimental import pallas as pl
from jax.experimental.pallas import tpu as pltpu


# ----------------------------- tiled linear kernel ---------------------------

def _linear_kernel(x_ref, w_ref, b_ref, o_ref, acc_ref):
    """One (tm, tn) output tile; accumulate over the K grid axis in f32 VMEM."""
    k = pl.program_id(2)

    @pl.when(k == 0)
    def _init():
        acc_ref[...] = jnp.zeros_like(acc_ref)

    acc_ref[...] += jnp.dot(x_ref[...], w_ref[...],
                            preferred_element_type=jnp.float32)

    @pl.when(k == pl.num_programs(2) - 1)
    def _finalize():
        o_ref[...] = (acc_ref[...] + b_ref[...]).astype(o_ref.dtype)


def _pick_tile(dim, pref, align):
    """Largest align-multiple tile <= pref that divides dim; else the full dim."""
    if dim <= pref:
        return dim
    t = (pref // align) * align
    while t >= align:
        if dim % t == 0:
            return t
        t -= align
    return dim


def pallas_linear(x, w, b, *, out_dtype=jnp.float32, compute_dtype=jnp.bfloat16,
                  tm=512, tn=512, tk=1024):
    """y = x @ w + b, tiled for the MXU.

    x: (M, K), w: (K, N) (already transposed vs. torch weight), b: (N,).
    MXU operands are `compute_dtype` (bf16); accumulation stays f32.
    Tiles 512/512/1024 keep ~7 MiB of VMEM with double buffering (well under the
    32 MiB scoped limit on every generation) while maximizing MXU work per DMA;
    they shrink automatically for small problems.
    """
    M, K = x.shape
    Kw, N = w.shape
    assert K == Kw

    tm = _pick_tile(M, tm, 16)     # 16 = bf16 sublane pack
    tn = _pick_tile(N, tn, 128)
    tk = _pick_tile(K, tk, 128)
    grid = (M // tm, N // tn, K // tk)

    xc = x.astype(compute_dtype)
    wc = w.astype(compute_dtype)   # no-op when weights are pre-cast at prep time
    b2 = b.reshape(1, N).astype(jnp.float32)

    return pl.pallas_call(
        _linear_kernel,
        out_shape=jax.ShapeDtypeStruct((M, N), out_dtype),
        grid_spec=pltpu.PrefetchScalarGridSpec(
            num_scalar_prefetch=0,
            grid=grid,
            in_specs=[
                pl.BlockSpec((tm, tk), lambda i, j, k: (i, k)),
                pl.BlockSpec((tk, tn), lambda i, j, k: (k, j)),
                pl.BlockSpec((1, tn), lambda i, j, k: (0, j)),
            ],
            out_specs=pl.BlockSpec((tm, tn), lambda i, j, k: (i, j)),
            scratch_shapes=[pltpu.VMEM((tm, tn), jnp.float32)],
        ),
        compiler_params=pltpu.CompilerParams(
            dimension_semantics=("parallel", "parallel", "arbitrary"),
            vmem_limit_bytes=32 * 1024 * 1024,
        ),
    )(xc, wc, b2)


# ------------------------- flash-style attention kernel ----------------------

def _make_flash_kernel(has_mask, compute_dtype):
    def kernel(*refs):
        if has_mask:
            q_ref, k_ref, v_ref, m_ref, o_ref, m_sc, l_sc, acc_sc = refs
        else:
            q_ref, k_ref, v_ref, o_ref, m_sc, l_sc, acc_sc = refs
        kv = pl.program_id(3)

        @pl.when(kv == 0)
        def _init():
            m_sc[...] = jnp.full_like(m_sc, -jnp.inf)
            l_sc[...] = jnp.zeros_like(l_sc)
            acc_sc[...] = jnp.zeros_like(acc_sc)

        q = q_ref[0, 0]            # (tq, Dh)  scale already folded into wq/bq
        k = k_ref[0, 0]            # (tkv, Dh)
        # contract on the last axis of both operands -> no explicit K transpose
        s = lax.dot_general(q, k, (((1,), (1,)), ((), ())),
                            preferred_element_type=jnp.float32)       # (tq, tkv) f32
        if has_mask:
            s = jnp.where(m_ref[0], s, jnp.float32(-1e30))

        m_prev = m_sc[...]
        m_new = jnp.maximum(m_prev, jnp.max(s, axis=-1, keepdims=True))
        alpha = jnp.exp(m_prev - m_new)
        p = jnp.exp(s - m_new)
        l_sc[...] = alpha * l_sc[...] + jnp.sum(p, axis=-1, keepdims=True)
        acc_sc[...] = alpha * acc_sc[...] + jnp.dot(
            p.astype(compute_dtype), v_ref[0, 0],
            preferred_element_type=jnp.float32)                       # (tq, Dh)
        m_sc[...] = m_new

        @pl.when(kv == pl.num_programs(3) - 1)
        def _finalize():
            inv = pl.reciprocal(l_sc[...], approx=True)
            o_ref[0, 0] = (acc_sc[...] * inv).astype(o_ref.dtype)

    return kernel


def pallas_flash_attention(q, k, v, mask=None, *, out_dtype=jnp.bfloat16,
                           compute_dtype=jnp.bfloat16, tq=256, tkv=512):
    """Online-softmax attention over head-major inputs.

    q: (B, H, Sq, Dh); k, v: (B, H, Skv, Dh).
    mask: optional (B, Sm, Skv) bool with Sm in {1, Sq}; broadcast over heads and
    (if Sm==1) over the q rows inside the kernel.
    1/sqrt(Dh) is already folded into the q projection, so scores are not rescaled.
    VMEM per grid step is O(tq*tkv + tkv*Dh): no (S, S) scores ever reside.
    """
    B, H, Sq, Dh = q.shape
    Skv = k.shape[2]
    tq = _pick_tile(Sq, tq, 8)
    tkv = _pick_tile(Skv, tkv, 128)    # 128-aligned keeps the mask's lane dim legal
    grid = (B, H, Sq // tq, Skv // tkv)

    args = [q.astype(compute_dtype), k.astype(compute_dtype), v.astype(compute_dtype)]
    in_specs = [
        pl.BlockSpec((1, 1, tq, Dh), lambda b, h, i, j: (b, h, i, 0)),
        pl.BlockSpec((1, 1, tkv, Dh), lambda b, h, i, j: (b, h, j, 0)),
        pl.BlockSpec((1, 1, tkv, Dh), lambda b, h, i, j: (b, h, j, 0)),
    ]
    has_mask = mask is not None
    if has_mask:
        Sm = mask.shape[1]
        args.append(mask)
        if Sm == 1:    # padding-style (B, 1, Skv) mask
            in_specs.append(pl.BlockSpec((1, 1, tkv), lambda b, h, i, j: (b, 0, j)))
        else:          # full (B, Sq, Skv) mask
            in_specs.append(pl.BlockSpec((1, tq, tkv), lambda b, h, i, j: (b, i, j)))

    kernel = _make_flash_kernel(has_mask, compute_dtype)
    return pl.pallas_call(
        kernel,
        out_shape=jax.ShapeDtypeStruct((B, H, Sq, Dh), out_dtype),
        grid_spec=pltpu.PrefetchScalarGridSpec(
            num_scalar_prefetch=0,
            grid=grid,
            in_specs=in_specs,
            out_specs=pl.BlockSpec((1, 1, tq, Dh), lambda b, h, i, j: (b, h, i, 0)),
            scratch_shapes=[
                pltpu.VMEM((tq, 1), jnp.float32),    # running max
                pltpu.VMEM((tq, 1), jnp.float32),    # running denom
                pltpu.VMEM((tq, Dh), jnp.float32),   # running output
            ],
        ),
        compiler_params=pltpu.CompilerParams(
            # 3 parallel axes feed both v7x TensorCores even at B=1; kv axis reduces.
            dimension_semantics=("parallel", "parallel", "parallel", "arbitrary"),
            vmem_limit_bytes=32 * 1024 * 1024,
        ),
    )(*args)


# ------------------------------ module wrapper --------------------------------

def init_mha_params(key, d_model):
    """nn.Linear-style init: U(-1/sqrt(fan_in), 1/sqrt(fan_in)); weights stored (din, dout)."""
    ks = jax.random.split(key, 8)
    bound = 1.0 / math.sqrt(d_model)

    def u(k, shape):
        return jax.random.uniform(k, shape, jnp.float32, minval=-bound, maxval=bound)

    return {
        "wq": u(ks[0], (d_model, d_model)), "bq": u(ks[1], (d_model,)),
        "wk": u(ks[2], (d_model, d_model)), "bk": u(ks[3], (d_model,)),
        "wv": u(ks[4], (d_model, d_model)), "bv": u(ks[5], (d_model,)),
        "wo": u(ks[6], (d_model, d_model)), "bo": u(ks[7], (d_model,)),
    }


def prepare_mha_params(params, num_heads, compute_dtype=jnp.bfloat16):
    """One-time weight preparation (hoisted out of the forward path):
    - fold 1/sqrt(Dh) into the q projection (weights AND bias),
    - pre-fuse wq|wk|wv / bq|bk|bv for the self-attention fast path,
    - pre-cast MXU weights to bf16, keep biases in f32 (added to the f32 accumulator).
    """
    D = params["wq"].shape[0]
    scale = 1.0 / math.sqrt(D // num_heads)
    wq_s, bq_s = params["wq"] * scale, params["bq"] * scale
    return {
        "wqkv": jnp.concatenate([wq_s, params["wk"], params["wv"]],
                                axis=1).astype(compute_dtype),
        "bqkv": jnp.concatenate([bq_s, params["bk"], params["bv"]]).astype(jnp.float32),
        "wq": wq_s.astype(compute_dtype),           "bq": bq_s.astype(jnp.float32),
        "wk": params["wk"].astype(compute_dtype),   "bk": params["bk"].astype(jnp.float32),
        "wv": params["wv"].astype(compute_dtype),   "bv": params["bv"].astype(jnp.float32),
        "wo": params["wo"].astype(compute_dtype),   "bo": params["bo"].astype(jnp.float32),
    }


def multi_head_attention(prepared, query, key, value, num_heads, mask=None,
                         compute_dtype=jnp.bfloat16):
    """Forward pass matching the PyTorch MultiHeadAttention (dropout unused in forward).

    `prepared` comes from prepare_mha_params (pre-fused / pre-cast / pre-scaled weights).
    """
    B, Sq, D = query.shape
    H = num_heads
    Dh = D // H

    mask_b = None
    if mask is not None:
        m = mask
        if m.ndim == 4:          # torch (B, 1, Sq, Skv) or (B, 1, 1, Skv) -> drop head dim
            m = m[:, 0]
        mask_b = m.astype(jnp.bool_)     # (B, Sq, Skv) or (B, 1, Skv)

    # NOTE: fused path is selected by object identity; semantically-equal but distinct
    # q/k/v arrays take the (correct, slightly slower) cross-attention path.
    if (query is key) and (key is value):
        # Self-attention: fused QKV -> one pallas_call, one activation DMA, one big matmul.
        qkv = pallas_linear(query.reshape(B * Sq, D), prepared["wqkv"], prepared["bqkv"],
                            out_dtype=compute_dtype, compute_dtype=compute_dtype)
        # (B*S, 3D) -> (3, B, H, S, Dh): head-major so each flash block is contiguous.
        qkv = qkv.reshape(B, Sq, 3, H, Dh).transpose(2, 0, 3, 1, 4)
        qh, kh, vh = qkv[0], qkv[1], qkv[2]
    else:
        # Cross-attention: separate projections (different source tensors).
        Skv = key.shape[1]
        q = pallas_linear(query.reshape(B * Sq, D), prepared["wq"], prepared["bq"],
                          out_dtype=compute_dtype, compute_dtype=compute_dtype)
        k = pallas_linear(key.reshape(B * Skv, D), prepared["wk"], prepared["bk"],
                          out_dtype=compute_dtype, compute_dtype=compute_dtype)
        v = pallas_linear(value.reshape(B * Skv, D), prepared["wv"], prepared["bv"],
                          out_dtype=compute_dtype, compute_dtype=compute_dtype)
        qh = q.reshape(B, Sq, H, Dh).transpose(0, 2, 1, 3)
        kh = k.reshape(B, Skv, H, Dh).transpose(0, 2, 1, 3)
        vh = v.reshape(B, Skv, H, Dh).transpose(0, 2, 1, 3)

    attn = pallas_flash_attention(qh, kh, vh, mask_b,
                                  out_dtype=compute_dtype, compute_dtype=compute_dtype)
    attn = attn.transpose(0, 2, 1, 3).reshape(B * Sq, D)   # merge heads

    out = pallas_linear(attn, prepared["wo"], prepared["bo"],
                        out_dtype=jnp.float32, compute_dtype=compute_dtype)
    return out.reshape(B, Sq, D)


# --------------------------- pure-JAX f32 reference ---------------------------

def reference_mha(params, query, key, value, num_heads, mask=None):
    B, S, D = query.shape
    H = num_heads
    Dh = D // H
    q = query.reshape(B * S, D) @ params["wq"] + params["bq"]
    k = key.reshape(-1, D) @ params["wk"] + params["bk"]
    v = value.reshape(-1, D) @ params["wv"] + params["bv"]
    Sk = key.shape[1]

    def split(x, s):
        return x.reshape(B, s, H, Dh).transpose(0, 2, 1, 3)  # (B, H, S, Dh)

    qh, kh, vh = split(q, S), split(k, Sk), split(v, Sk)
    scores = jnp.einsum("bhqd,bhkd->bhqk", qh, kh) / math.sqrt(Dh)
    if mask is not None:
        scores = jnp.where(mask, scores, jnp.float32(-1e30))
    w = jax.nn.softmax(scores, axis=-1)
    o = jnp.einsum("bhqk,bhkd->bhqd", w, vh)
    o = o.transpose(0, 2, 1, 3).reshape(B * S, D)
    return (o @ params["wo"] + params["bo"]).reshape(B, S, D)


# --------------------------------- main ---------------------------------------

if __name__ == "__main__":
    B, S, D, H = 2, 8, 32, 4  # batch, seq, d_model, num_heads (head_dim = 8)

    root = jax.random.PRNGKey(0)
    kp, kx, kk, kv, km = jax.random.split(root, 5)

    params = init_mha_params(kp, D)
    prepared = prepare_mha_params(params, H)   # one-time weight prep (not per call)

    x = jax.random.normal(kx, (B, S, D), jnp.float32)
    key_t = jax.random.normal(kk, (B, S, D), jnp.float32)
    val_t = jax.random.normal(kv, (B, S, D), jnp.float32)

    # padding-style mask: (B, 1, 1, S) bool with at least one valid position per row
    mask = jax.random.bernoulli(km, p=0.8, shape=(B, 1, 1, S))
    mask = mask.at[:, :, :, 0].set(True)

    # bf16 MXU compute vs f32 reference -> tolerance sized for bf16 rounding
    TOL = dict(atol=5e-2, rtol=5e-2)

    # 1) self-attention (fused-QKV path) with mask
    out = multi_head_attention(prepared, x, x, x, H, mask=mask)
    out = jax.block_until_ready(out)
    ref = reference_mha(params, x, x, x, H, mask=mask)
    assert out.shape == ref.shape
    assert jnp.allclose(out, ref, **TOL), "mismatch (self-attention, mask)"

    # 2) cross-attention (separate-projection path), no mask
    out2 = multi_head_attention(prepared, x, key_t, val_t, H, mask=None)
    out2 = jax.block_until_ready(out2)
    ref2 = reference_mha(params, x, key_t, val_t, H, mask=None)
    assert jnp.allclose(out2, ref2, **TOL), "mismatch (cross-attention, no mask)"

    print("KERNEL_OK")
</pallas_src>

<mosaic_0001>
module attributes {stable_mosaic.version = 11 : i64} {
  func.func @_linear_kernel(%arg0: i32, %arg1: i32, %arg2: i32, %arg3: memref<16x32xbf16, #tpu.memory_space<vmem>>, %arg4: memref<32x96xbf16, #tpu.memory_space<vmem>>, %arg5: memref<1x96xf32, #tpu.memory_space<vmem>>, %arg6: memref<16x96xbf16, #tpu.memory_space<vmem>>, %arg7: memref<16x96xf32, #tpu.memory_space<vmem>>) attributes {dimension_semantics = [#tpu.dimension_semantics<parallel>, #tpu.dimension_semantics<parallel>, #tpu.dimension_semantics<arbitrary>], iteration_bounds = array<i64: 1, 1, 1>, scalar_prefetch = 0 : i64, scratch_operands = 1 : i64, tpu.core_type = #tpu.core_type<tc>, window_params = [{transform_indices = @transform_0, window_bounds = array<i64: 16, 32>}, {transform_indices = @transform_1, window_bounds = array<i64: 32, 96>}, {transform_indices = @transform_2, window_bounds = array<i64: 1, 96>}, {transform_indices = @transform_3, window_bounds = array<i64: 16, 96>}]} {
    %c0_i32 = arith.constant 0 : i32
    %0 = arith.cmpi eq, %arg2, %c0_i32 : i32
    %1 = arith.extui %0 : i1 to i32
    %c0_i32_0 = arith.constant 0 : i32
    %2 = arith.cmpi ne, %1, %c0_i32_0 : i32
    scf.if %2 {
      %cst_10 = arith.constant 0.000000e+00 : f32
      %12 = vector.broadcast %cst_10 : f32 to vector<16x96xf32>
      %c0_11 = arith.constant 0 : index
      %c0_12 = arith.constant 0 : index
      %13 = vector.load %arg7[%c0_11, %c0_12] : memref<16x96xf32, #tpu.memory_space<vmem>>, vector<16x96xf32>
      tpu.vector_store %arg7[%c0_11, %c0_12], %12 {strides = array<i32>} : memref<16x96xf32, #tpu.memory_space<vmem>>, vector<16x96xf32>,
    } else {
    }
    %c0 = arith.constant 0 : index
    %c0_1 = arith.constant 0 : index
    %3 = vector.load %arg7[%c0, %c0_1] : memref<16x96xf32, #tpu.memory_space<vmem>>, vector<16x96xf32>
    %c0_2 = arith.constant 0 : index
    %c0_3 = arith.constant 0 : index
    %4 = vector.load %arg3[%c0_2, %c0_3] : memref<16x32xbf16, #tpu.memory_space<vmem>>, vector<16x32xbf16>
    %c0_4 = arith.constant 0 : index
    %c0_5 = arith.constant 0 : index
    %5 = vector.load %arg4[%c0_4, %c0_5] : memref<32x96xbf16, #tpu.memory_space<vmem>>, vector<32x96xbf16>
    %cst = arith.constant dense<0.000000e+00> : vector<16x96xf32>
    %6 = tpu.matmul %4, %5, %cst {dimension_numbers = #tpu.dot_dimension_numbers<[1], [0], [0], [1], [0, 0, 1, 1], [], []>} : vector<16x32xbf16>, vector<32x96xbf16>, vector<16x96xf32> -> vector<16x96xf32>
    %7 = arith.addf %3, %6 : vector<16x96xf32>
    %c0_6 = arith.constant 0 : index
    %c0_7 = arith.constant 0 : index
    %8 = vector.load %arg7[%c0_6, %c0_7] : memref<16x96xf32, #tpu.memory_space<vmem>>, vector<16x96xf32>
    tpu.vector_store %arg7[%c0_6, %c0_7], %7 {strides = array<i32>} : memref<16x96xf32, #tpu.memory_space<vmem>>, vector<16x96xf32>,
    %c0_i32_8 = arith.constant 0 : i32
    %9 = arith.cmpi eq, %arg2, %c0_i32_8 : i32
    %10 = arith.extui %9 : i1 to i32
    %c0_i32_9 = arith.constant 0 : i32
    %11 = arith.cmpi ne, %10, %c0_i32_9 : i32
    scf.if %11 {
      %c0_10 = arith.constant 0 : index
      %c0_11 = arith.constant 0 : index
      %12 = vector.load %arg7[%c0_10, %c0_11] : memref<16x96xf32, #tpu.memory_space<vmem>>, vector<16x96xf32>
      %c0_12 = arith.constant 0 : index
      %c0_13 = arith.constant 0 : index
      %13 = vector.load %arg5[%c0_12, %c0_13] : memref<1x96xf32, #tpu.memory_space<vmem>>, vector<1x96xf32>
      %14 = vector.broadcast %13 : vector<1x96xf32> to vector<16x96xf32>
      %15 = arith.addf %12, %14 : vector<16x96xf32>
      %16 = arith.truncf %15 : vector<16x96xf32> to vector<16x96xbf16>
      %c0_14 = arith.constant 0 : index
      %c0_15 = arith.constant 0 : index
      %17 = vector.load %arg6[%c0_14, %c0_15] : memref<16x96xbf16, #tpu.memory_space<vmem>>, vector<16x96xbf16>
      tpu.vector_store %arg6[%c0_14, %c0_15], %16 {strides = array<i32>} : memref<16x96xbf16, #tpu.memory_space<vmem>>, vector<16x96xbf16>,
    } else {
    }
    return
  }
  func.func @transform_0(%arg0: i32, %arg1: i32, %arg2: i32) -> (i32, i32) {
    %c0_i32 = arith.constant 0 : i32
    return %arg0, %arg2 : i32, i32
  }
  func.func @transform_1(%arg0: i32, %arg1: i32, %arg2: i32) -> (i32, i32) {
    %c0_i32 = arith.constant 0 : i32
    return %arg2, %arg1 : i32, i32
  }
  func.func @transform_2(%arg0: i32, %arg1: i32, %arg2: i32) -> (i32, i32) {
    %c0_i32 = arith.constant 0 : i32
    %c0_i32_0 = arith.constant 0 : i32
    return %c0_i32, %arg1 : i32, i32
  }
  func.func @transform_3(%arg0: i32, %arg1: i32, %arg2: i32) -> (i32, i32) {
    %c0_i32 = arith.constant 0 : i32
    return %arg0, %arg1 : i32, i32
  }
}

</mosaic_0001>

<llo_original>
// kernel: tpu_custom_call.1
$region0: #{tpu_custom_call.1}
  #allocation0 [shape = 'u32[]', space=smem, size = 0x4, offset = 0x4, fixed_abs, tag = 'smem constant byte address 0x4 - core index']
  #allocation1 [shape = 'u32[144,128]{1,0:T(1,128)}', space=vmem, size = 0x12000, scoped, tag = 'internal scratch']
  #allocation2 [shape = 'f32[16,96]{1,0:T(8,128)}', space=vmem, size = 0x2000, scoped, tag = 'scratch operand']
  %s0 = inlined_call_operand.hbm [shape: bf16[16,32], index: 0, kind: input, shape index: {}]
  %s1 = inlined_call_operand.hbm [shape: bf16[32,96], index: 1, kind: input, shape index: {}]
  %s2 = inlined_call_operand.vmem [shape: f32[1,96], index: 2, kind: input, shape index: {}]
  %s3 = inlined_call_operand.hbm [shape: bf16[16,96], index: 3, kind: output, shape index: {}]
  %s4 = sld [smem:[#allocation0]]
  $region38: #{tpu_custom_call.1} parent=0
    _
  %s6 = ssub.s32 1, %s4
  %s7 = scalar_select 0, %s6, %s4
  $region1: #{tpu_custom_call.1} parent=0
    #allocation3 [shape = 'u8[4096]{0}', space=vmem, size = 0x1000, scoped, tag = 'input window, operand 0, single buffered']
    #allocation4 [shape = 's32[1]{0}', space=sflag, size = 0x4, scoped, tag = 'scoped memory for tpu_custom_call.1']
    #allocation5 [shape = 's32[1]{0}', space=sflag, size = 0x4, scoped, tag = 'scoped memory for tpu_custom_call.1']
    #allocation6 [shape = 'u8[8192]{0}', space=vmem, size = 0x2000, scoped, tag = 'input window, operand 1, single buffered']
    #allocation7 [shape = 's32[1]{0}', space=sflag, size = 0x4, scoped, tag = 'scoped memory for tpu_custom_call.1']
    #allocation8 [shape = 'u8[4096]{0}', space=vmem, size = 0x1000, scoped, tag = 'output window, operand 0, single buffered']
    %8 = vsyncpa [#allocation4], 0
    %9 = vsyncpa [#allocation7], 0
    %10 = vsyncpa [#allocation5], 0
    // Predicated region
    $region2: #{tpu_custom_call.1} parent=1 // pred_check
      _
    $region3: #{tpu_custom_call.1} parent=1 // pred_check_branch
      %12 = sbr.rel (0) target = $region5
    $region4: #{tpu_custom_call.1} parent=1 // pred_region
      %s14 = ssub.s32 128, 128
      %15 = vsyncadd [#allocation4], %s14
      %s16 = sshll.u32 [#allocation3], 4
      %s17 = int_to_ptr.vmem [resolvable:$true] %s16
      %22 = dma.hbm_to_vmem [thread:$0]  %s0, 128, %s17, [#allocation4], 64, 64, 4
    $region5: #{tpu_custom_call.1} parent=1 // pred_fallthru
      _
    // Predicated region
    $region6: #{tpu_custom_call.1} parent=1 // pred_check
      _
    $region7: #{tpu_custom_call.1} parent=1 // pred_check_branch
      %24 = sbr.rel (0) target = $region9
    $region8: #{tpu_custom_call.1} parent=1 // pred_region
      %s26 = ssub.s32 256, 256
      %27 = vsyncadd [#allocation7], %s26
      %s28 = sshll.u32 [#allocation6], 4
      %s29 = int_to_ptr.vmem [resolvable:$true] %s28
      %34 = dma.hbm_to_vmem [thread:$0]  %s1, 256, %s29, [#allocation7], 64, 64, 4
    $region9: #{tpu_custom_call.1} parent=1 // pred_fallthru
      _
    // Predicated region
    $region10: #{tpu_custom_call.1} parent=1 // pred_check
      _
    $region11: #{tpu_custom_call.1} parent=1 // pred_check_branch
      %36 = sbr.rel (0) target = $region13
    $region12: #{tpu_custom_call.1} parent=1 // pred_region
      _
    $region13: #{tpu_custom_call.1} parent=1 // pred_fallthru
      _
    // Predicated region
    $region14: #{tpu_custom_call.1} parent=1 // pred_check
      _
    $region15: #{tpu_custom_call.1} parent=1 // pred_check_branch
      %38 = sbr.rel (0) target = $region17
    $region16: #{tpu_custom_call.1} parent=1 // pred_region
      %39 = dma.done [#allocation4], 128
    $region17: #{tpu_custom_call.1} parent=1 // pred_fallthru
      _
    // Predicated region
    $region18: #{tpu_custom_call.1} parent=1 // pred_check
      _
    $region19: #{tpu_custom_call.1} parent=1 // pred_check_branch
      %41 = sbr.rel (0) target = $region21
    $region20: #{tpu_custom_call.1} parent=1 // pred_region
      %42 = dma.done [#allocation7], 256
    $region21: #{tpu_custom_call.1} parent=1 // pred_fallthru
      _
    %p44 = scmp.eq.s32.totalorder 0, 0
    // Predicated region
    $region22: #{tpu_custom_call.1} parent=1 // pred_check
      %p45 = pneg %p44
    $region23: #{tpu_custom_call.1} parent=1 // pred_check_branch
      %47 = sbr.rel (%p45) target = $region25
    $region24: #{tpu_custom_call.1} parent=1 // pred_region
      %vm48 = vcmask 785408
      %49 = vst.msk [vmem:[#allocation2] sm:$0xff] %vm48, 0.0
      %50 = vst.msk [vmem:[#allocation2 + $0x8] sm:$0xff] %vm48, 0.0
    $region25: #{tpu_custom_call.1} parent=1 // pred_fallthru
      _
    %v51 = vld [vmem:[#allocation2] sm:$0xff]
    %v52 = vld [vmem:[#allocation2 + $0x8] sm:$0xff]
    %v53 = vld [vmem:[#allocation3] sm:$0xf]
    %v54 = vld [vmem:[#allocation3 + $0x4] sm:$0xf]
    %v55 = vld [vmem:[#allocation6] sm:$0xf]
    %v56 = vld [vmem:[#allocation6 + $0x4] sm:$0xf]
    %v57 = vld [vmem:[#allocation6 + $0x8] sm:$0xf]
    %v58 = vld [vmem:[#allocation6 + $0xc] sm:$0xf]
    %v61 = vunpack.c.l.b16 %v53
    %v62 = vunpack.c.l.b16 %v54
    %v63 = vpack.c.b16 %v62, %v61
    %v68 = vunpack.c.l.b16 %v55
    %v69 = vunpack.c.l.b16 %v56
    %v70 = vunpack.c.l.b16 %v57
    %v71 = vunpack.c.l.b16 %v58
    %v72 = vpack.c.b16 %v69, %v68
    %v73 = vpack.c.b16 %v71, %v70
    %vm76 = vcmask 261120
    %v78 = vsel %vm76, %v63, 0
    %80 = vmatprep.subr.bf16.mxu0 0
    %81 = vmatpush1.bf16.msra.mxu0 0
    %82 = vmatprep.subr.bf16.mxu0 0
    %83 = vmatpush1.bf16.msra.mxu0 0
    %84 = vmatprep.subr.bf16.mxu0 0
    %85 = vmatpush1.bf16.msra.mxu0 0
    %86 = vmatprep.subr.bf16.mxu0 0
    %87 = vmatpush1.bf16.msra.mxu0 0
    %88 = vmatprep.subr.bf16.mxu0 0
    %89 = vmatpush1.bf16.msra.mxu0 0
    %90 = vmatprep.subr.bf16.mxu0 0
    %91 = vmatpush1.bf16.msra.mxu0 0
    %92 = vmatprep.subr.bf16.mxu0 0
    %93 = vmatpush1.bf16.msra.mxu0 %v73
    %94 = vmatprep.subr.bf16.mxu0 0
    %95 = vmatpush1.bf16.msra.mxu0 %v72
    %96 = vmatprep.subr.bf16.mxu0 0
    %97 = vmatpush2.bf16.msra.mxu0 0
    %98 = vmatprep.subr.bf16.mxu0 0
    %99 = vmatpush2.bf16.msra.mxu0 0
    %100 = vmatprep.subr.bf16.mxu0 0
    %101 = vmatpush2.bf16.msra.mxu0 0
    %102 = vmatprep.subr.bf16.mxu0 0
    %103 = vmatpush2.bf16.msra.mxu0 0
    %104 = vmatprep.subr.bf16.mxu0 0
    %105 = vmatpush2.bf16.msra.mxu0 0
    %106 = vmatprep.subr.bf16.mxu0 0
    %107 = vmatpush2.bf16.msra.mxu0 0
    %108 = vmatprep.subr.bf16.mxu0 0
    %109 = vmatpush2.bf16.msra.mxu0 0
    %110 = vmatprep.subr.bf16.mxu0 0
    %111 = vmatpush2.bf16.msra.mxu0 0
    %112 = vmatprep.mubr.bf16.mxu0 0
    %113 = vmatmul.mubr.bf16.gmra.mxu0 %v78
    %v114 = vpop.f32.mrf.mxu0
    %v115 = vadd.f32 0.0, %v114
    %v116 = vpop.f32.mrf.mxu0
    %v117 = vpop.f32.mrf.mxu0
    %v118 = vadd.f32 0.0, %v117
    %v119 = vpop.f32.mrf.mxu0
    %120 = vdwg.mxu0
    %v121 = vadd.f32 %v51, %v115
    %v122 = vadd.f32 %v52, %v118
    %vm123 = vcmask 785408
    %124 = vst.msk [vmem:[#allocation2] sm:$0xff] %vm123, %v121
    %125 = vst.msk [vmem:[#allocation2 + $0x8] sm:$0xff] %vm123, %v122
    // Predicated region
    $region26: #{tpu_custom_call.1} parent=1 // pred_check
      %p126 = pneg %p44
    $region27: #{tpu_custom_call.1} parent=1 // pred_check_branch
      %128 = sbr.rel (%p126) target = $region29
    $region28: #{tpu_custom_call.1} parent=1 // pred_region
      %v129 = vld [vmem:[#allocation2] sm:$0xff]
      %v130 = vld [vmem:[#allocation2 + $0x8] sm:$0xff]
      %v131 = vld [vmem:[%s2] sm:$0x1]
      %v133 = vlaneseq
      %v134 = vshrl.u32 %v133, 7
      %v135 = vsub.s32 0, %v134
      %v136 = vrot.slane %v131, %v135
      %v138 = vadd.f32 %v129, %v136
      %v139 = vadd.f32 %v130, %v136
      %v140 = vpack.c.bf16 %v139, %v138
      %v142 = vunpack.c.l.b16 %v140
      %v143 = vunpack.c.h.b16 %v140
      %v144 = vpack.c.b16 %v142, %v142
      %v145 = vpack.c.b16 %v143, %v143
      %vm148 = vcmask 781312
      %149 = vst.msk [vmem:[#allocation8] sm:$0xf] %vm148, %v144
      %150 = vst.msk [vmem:[#allocation8 + $0x4] sm:$0xf] %vm148, %v145
    $region29: #{tpu_custom_call.1} parent=1 // pred_fallthru
      _
    // Predicated region
    $region30: #{tpu_custom_call.1} parent=1 // pred_check
      _
    $region31: #{tpu_custom_call.1} parent=1 // pred_check_branch
      %152 = sbr.rel (0) target = $region33
    $region32: #{tpu_custom_call.1} parent=1 // pred_region
      %s154 = ssub.s32 128, 128
      %155 = vsyncadd [#allocation5], %s154
      %s156 = sshll.u32 [#allocation8], 4
      %s157 = int_to_ptr.vmem [resolvable:$true] %s156
      %162 = dma.vmem_to_hbm [thread:$0]  %s157, 128, %s3, [#allocation5], 64, 64, 4
    $region33: #{tpu_custom_call.1} parent=1 // pred_fallthru
      _
    // Predicated region
    $region34: #{tpu_custom_call.1} parent=1 // pred_check
      _
    $region35: #{tpu_custom_call.1} parent=1 // pred_check_branch
      %164 = sbr.rel (0) target = $region37
    $region36: #{tpu_custom_call.1} parent=1 // pred_region
      %165 = dma.done [#allocation5], 128
    $region37: #{tpu_custom_call.1} parent=1 // pred_fallthru
      _
    %166 = vsyncpa [#allocation4], 1
    %167 = vsyncpa [#allocation7], 1
    %168 = vsyncpa [#allocation5], 1

</llo_original>
